<compile_context>
chip_gen: v7x
topology: tpu7x:2x2x1
jax: 0.10.0
libtpu: 0.0.40
codegen_flags: <defaults>
</compile_context>

<pallas_src>
import jax
import jax.numpy as jnp
from jax.experimental import pallas as pl
from jax.experimental.pallas import tpu as pltpu


def cam_kernel(x_ref, w1_ref, b1_ref, w2_ref, b2_ref, o_ref):
    # x_ref : (Bblk, C, HW)  current block of batch elements
    # w1_ref: (Ch, C)        fc1 weight (out, in) — 1x1 conv squeezed
    # b1_ref: (Ch, 1)        fc1 bias (column)
    # w2_ref: (C, Ch)        fc2 weight (out, in)
    # b2_ref: (C, 1)         fc2 bias (column)
    w1 = w1_ref[...]
    b1 = b1_ref[...]
    w2 = w2_ref[...]
    b2 = b2_ref[...]

    bblk = x_ref.shape[0]
    # The block always spans the full spatial extent, so the static HW here is
    # the true H*W (no partial-tile garbage folded into the mean).
    inv_hw = 1.0 / x_ref.shape[-1]

    # Bblk is kept small by the wrapper, so a static unroll is fine; each
    # iteration is one lane-reduction, two tiny dots, and one broadcast mul.
    for b in range(bblk):
        x2 = x_ref[b]                                             # (C, HW), native dtype

        # AdaptiveAvgPool2d(1): mean over the lane (spatial) axis with f32
        # accumulation; keepdims keeps C on the sublane axis -> (C, 1) column,
        # so no lane->sublane relayout of the pooled vector is needed.
        avg = jnp.sum(x2, axis=-1, keepdims=True, dtype=jnp.float32) * inv_hw

        # fc1 (1x1 conv) + ReLU: (Ch, C) @ (C, 1) -> (Ch, 1)
        h = jnp.dot(w1, avg, preferred_element_type=jnp.float32) + b1
        h = jnp.maximum(h, 0.0)

        # fc2 (1x1 conv) + Sigmoid: (C, Ch) @ (Ch, 1) -> (C, 1)
        a = jax.nn.sigmoid(jnp.dot(w2, h, preferred_element_type=jnp.float32) + b2)

        # Per-channel scale: (C, HW) * (C, 1) is a lane-splat broadcast in the
        # native dtype (no block-sized f32 temp, no relayout).
        o_ref[b] = (x2 * a.astype(x2.dtype)).astype(o_ref.dtype)


def cam_module(x, w1, b1, w2, b2, *, block_batch=None,
               vmem_budget_bytes=48 * 2**20, max_unroll=8):
    """x: (B, C, H, W); weights as produced by make_params (Conv2d 1x1 squeezed)."""
    B, C, H, W = x.shape
    HW = H * W
    Ch = w1.shape[0]
    itemsize = jnp.dtype(x.dtype).itemsize
    xf = x.reshape(B, C, HW)

    weight_bytes = (Ch * C + C * Ch + Ch + C) * 4

    def fits(bblk):
        # double-buffered input block + double-buffered output block,
        # plus resident (double-buffered) weights + 1 MiB slack.
        block_bytes = bblk * C * HW * itemsize
        return 4 * block_bytes + 2 * weight_bytes + (1 << 20) <= vmem_budget_bytes

    if block_batch is None:
        # Largest divisor of B (capped to keep the static unroll short) whose
        # double-buffered block fits in the VMEM budget. Fewer, larger blocks
        # -> fewer grid steps (~0.35 us each) and better DMA efficiency.
        block_batch = 1
        for bb in range(min(B, max_unroll), 0, -1):
            if B % bb == 0 and fits(bb):
                block_batch = bb
                break
    assert B % block_batch == 0
    # TODO(synk): if even a (1, C, HW) block exceeds the VMEM budget (very
    # large C*HW, esp. on v7x's 64 MiB), a two-pass pool+FC / HW-tiled scale
    # kernel is needed; not required at these sizes.

    grid = (B // block_batch,)

    cost = pl.CostEstimate(
        flops=2 * B * C * HW + 4 * B * C * Ch,        # pool + scale + two FCs
        transcendentals=B * C,                        # sigmoid
        bytes_accessed=2 * B * C * HW * itemsize + weight_bytes,
    )

    out = pl.pallas_call(
        cam_kernel,
        out_shape=jax.ShapeDtypeStruct((B, C, HW), x.dtype),
        grid=grid,
        in_specs=[
            pl.BlockSpec((block_batch, C, HW), lambda g: (g, 0, 0)),  # x block
            pl.BlockSpec((Ch, C), lambda g: (0, 0)),                  # w1 (full)
            pl.BlockSpec((Ch, 1), lambda g: (0, 0)),                  # b1 (column)
            pl.BlockSpec((C, Ch), lambda g: (0, 0)),                  # w2 (full)
            pl.BlockSpec((C, 1), lambda g: (0, 0)),                   # b2 (column)
        ],
        out_specs=pl.BlockSpec((block_batch, C, HW), lambda g: (g, 0, 0)),
        compiler_params=pltpu.CompilerParams(
            dimension_semantics=("parallel",),
            vmem_limit_bytes=vmem_budget_bytes,
        ),
        cost_estimate=cost,
    )(xf, w1, b1.reshape(Ch, 1), w2, b2.reshape(C, 1))

    return out.reshape(B, C, H, W)


def make_params(key, channels, reduction=16):
    """Deterministic synthetic init matching nn.Conv2d(..., kernel_size=1) shapes."""
    hidden = channels // reduction
    k1, k2, k3, k4 = jax.random.split(key, 4)
    # Conv2d weight shape (out, in, 1, 1) -> squeeze to (out, in)
    w1 = jax.random.normal(k1, (hidden, channels), jnp.float32) * 0.1
    b1 = jax.random.normal(k2, (hidden,), jnp.float32) * 0.1
    w2 = jax.random.normal(k3, (channels, hidden), jnp.float32) * 0.1
    b2 = jax.random.normal(k4, (channels,), jnp.float32) * 0.1
    return w1, b1, w2, b2


def cam_reference(x, w1, b1, w2, b2):
    """Pure-JAX reference matching the PyTorch forward."""
    avg = jnp.mean(x, axis=(2, 3))                      # (B, C)
    h = jnp.maximum(avg @ w1.T + b1, 0.0)               # (B, Ch)
    a = jax.nn.sigmoid(h @ w2.T + b2)                   # (B, C)
    return x * a[:, :, None, None]


if __name__ == "__main__":
    key = jax.random.PRNGKey(0)
    kx, kp = jax.random.split(key)

    B, C, H, W = 2, 32, 16, 16      # channels=32, reduction=16 -> hidden=2
    x = jax.random.normal(kx, (B, C, H, W), jnp.float32)
    w1, b1, w2, b2 = make_params(kp, C, reduction=16)

    ref = cam_reference(x, w1, b1, w2, b2)

    # Fused path: whole batch in a single grid step.
    out = jax.block_until_ready(cam_module(x, w1, b1, w2, b2))
    assert out.shape == ref.shape
    assert jnp.allclose(out, ref, rtol=1e-5, atol=1e-5), "mismatch (fused path)"

    # Gridded fallback path: one batch element per grid step.
    out_g = jax.block_until_ready(cam_module(x, w1, b1, w2, b2, block_batch=1))
    assert jnp.allclose(out_g, ref, rtol=1e-5, atol=1e-5), "mismatch (gridded path)"

    print("KERNEL_OK")
</pallas_src>

<mosaic_0001>
module attributes {stable_mosaic.version = 11 : i64} {
  func.func @cam_kernel(%arg0: i32, %arg1: memref<2x32x256xf32, #tpu.memory_space<vmem>>, %arg2: memref<2x32xf32, #tpu.memory_space<vmem>>, %arg3: memref<2x1xf32, #tpu.memory_space<vmem>>, %arg4: memref<32x2xf32, #tpu.memory_space<vmem>>, %arg5: memref<32x1xf32, #tpu.memory_space<vmem>>, %arg6: memref<2x32x256xf32, #tpu.memory_space<vmem>>) attributes {dimension_semantics = [#tpu.dimension_semantics<parallel>], iteration_bounds = array<i64: 1>, scalar_prefetch = 0 : i64, scratch_operands = 0 : i64, tpu.core_type = #tpu.core_type<tc>, window_params = [{transform_indices = @transform_0, window_bounds = array<i64: 2, 32, 256>}, {pipeline_mode = #tpu.pipeline_mode<synchronous>, transform_indices = @transform_1, window_bounds = array<i64: 2, 32>}, {pipeline_mode = #tpu.pipeline_mode<synchronous>, transform_indices = @transform_2, window_bounds = array<i64: 2, 1>}, {pipeline_mode = #tpu.pipeline_mode<synchronous>, transform_indices = @transform_3, window_bounds = array<i64: 32, 2>}, {pipeline_mode = #tpu.pipeline_mode<synchronous>, transform_indices = @transform_4, window_bounds = array<i64: 32, 1>}, {transform_indices = @transform_5, window_bounds = array<i64: 2, 32, 256>}]} {
    %c0 = arith.constant 0 : index
    %c0_0 = arith.constant 0 : index
    %0 = vector.load %arg2[%c0, %c0_0] : memref<2x32xf32, #tpu.memory_space<vmem>>, vector<2x32xf32>
    %c0_1 = arith.constant 0 : index
    %c0_2 = arith.constant 0 : index
    %1 = vector.load %arg3[%c0_1, %c0_2] : memref<2x1xf32, #tpu.memory_space<vmem>>, vector<2x1xf32>
    %c0_3 = arith.constant 0 : index
    %c0_4 = arith.constant 0 : index
    %2 = vector.load %arg4[%c0_3, %c0_4] : memref<32x2xf32, #tpu.memory_space<vmem>>, vector<32x2xf32>
    %c0_5 = arith.constant 0 : index
    %c0_6 = arith.constant 0 : index
    %3 = vector.load %arg5[%c0_5, %c0_6] : memref<32x1xf32, #tpu.memory_space<vmem>>, vector<32x1xf32>
    %c0_7 = arith.constant 0 : index
    %c0_8 = arith.constant 0 : index
    %c0_9 = arith.constant 0 : index
    %4 = vector.load %arg1[%c0_7, %c0_8, %c0_9] : memref<2x32x256xf32, #tpu.memory_space<vmem>>, vector<1x32x256xf32>
    %5 = vector.shape_cast %4 : vector<1x32x256xf32> to vector<32x256xf32>
    %cst = arith.constant dense<0.000000e+00> : vector<32xf32>
    %6 = vector.multi_reduction <add>, %5, %cst [1] : vector<32x256xf32> to vector<32xf32>
    %7 = vector.shape_cast %6 : vector<32xf32> to vector<32x1xf32>
    %cst_10 = arith.constant 3.906250e-03 : f32
    %8 = vector.broadcast %cst_10 : f32 to vector<32x1xf32>
    %9 = arith.mulf %7, %8 : vector<32x1xf32>
    %cst_11 = arith.constant dense<0.000000e+00> : vector<2x1xf32>
    %10 = tpu.matmul %0, %9, %cst_11 {dimension_numbers = #tpu.dot_dimension_numbers<[1], [0], [0], [1], [0, 0, 1, 1], [], []>} : vector<2x32xf32>, vector<32x1xf32>, vector<2x1xf32> -> vector<2x1xf32>
    %11 = arith.addf %10, %1 : vector<2x1xf32>
    %cst_12 = arith.constant 0.000000e+00 : f32
    %12 = vector.broadcast %cst_12 : f32 to vector<2x1xf32>
    %13 = arith.maximumf %11, %12 : vector<2x1xf32>
    %cst_13 = arith.constant dense<0.000000e+00> : vector<32x1xf32>
    %14 = tpu.matmul %2, %13, %cst_13 {dimension_numbers = #tpu.dot_dimension_numbers<[1], [0], [0], [1], [0, 0, 1, 1], [], []>} : vector<32x2xf32>, vector<2x1xf32>, vector<32x1xf32> -> vector<32x1xf32>
    %15 = arith.addf %14, %3 : vector<32x1xf32>
    %16 = arith.negf %15 : vector<32x1xf32>
    %17 = math.exp %16 : vector<32x1xf32>
    %cst_14 = arith.constant 1.000000e+00 : f32
    %18 = vector.broadcast %cst_14 : f32 to vector<32x1xf32>
    %19 = arith.addf %18, %17 : vector<32x1xf32>
    %20 = arith.divf %18, %19 : vector<32x1xf32>
    %21 = vector.broadcast %20 : vector<32x1xf32> to vector<32x256xf32>
    %22 = arith.mulf %5, %21 : vector<32x256xf32>
    %c0_15 = arith.constant 0 : index
    %c0_16 = arith.constant 0 : index
    %c0_17 = arith.constant 0 : index
    %23 = vector.load %arg6[%c0_15, %c0_16, %c0_17] : memref<2x32x256xf32, #tpu.memory_space<vmem>>, vector<1x32x256xf32>
    %24 = vector.shape_cast %23 : vector<1x32x256xf32> to vector<32x256xf32>
    %25 = vector.shape_cast %22 : vector<32x256xf32> to vector<1x32x256xf32>
    tpu.vector_store %arg6[%c0_15, %c0_16, %c0_17], %25 {strides = array<i32>} : memref<2x32x256xf32, #tpu.memory_space<vmem>>, vector<1x32x256xf32>,
    %c1 = arith.constant 1 : index
    %c0_18 = arith.constant 0 : index
    %c0_19 = arith.constant 0 : index
    %26 = vector.load %arg1[%c1, %c0_18, %c0_19] : memref<2x32x256xf32, #tpu.memory_space<vmem>>, vector<1x32x256xf32>
    %27 = vector.shape_cast %26 : vector<1x32x256xf32> to vector<32x256xf32>
    %cst_20 = arith.constant dense<0.000000e+00> : vector<32xf32>
    %28 = vector.multi_reduction <add>, %27, %cst_20 [1] : vector<32x256xf32> to vector<32xf32>
    %29 = vector.shape_cast %28 : vector<32xf32> to vector<32x1xf32>
    %cst_21 = arith.constant 3.906250e-03 : f32
    %30 = vector.broadcast %cst_21 : f32 to vector<32x1xf32>
    %31 = arith.mulf %29, %30 : vector<32x1xf32>
    %cst_22 = arith.constant dense<0.000000e+00> : vector<2x1xf32>
    %32 = tpu.matmul %0, %31, %cst_22 {dimension_numbers = #tpu.dot_dimension_numbers<[1], [0], [0], [1], [0, 0, 1, 1], [], []>} : vector<2x32xf32>, vector<32x1xf32>, vector<2x1xf32> -> vector<2x1xf32>
    %33 = arith.addf %32, %1 : vector<2x1xf32>
    %cst_23 = arith.constant 0.000000e+00 : f32
    %34 = vector.broadcast %cst_23 : f32 to vector<2x1xf32>
    %35 = arith.maximumf %33, %34 : vector<2x1xf32>
    %cst_24 = arith.constant dense<0.000000e+00> : vector<32x1xf32>
    %36 = tpu.matmul %2, %35, %cst_24 {dimension_numbers = #tpu.dot_dimension_numbers<[1], [0], [0], [1], [0, 0, 1, 1], [], []>} : vector<32x2xf32>, vector<2x1xf32>, vector<32x1xf32> -> vector<32x1xf32>
    %37 = arith.addf %36, %3 : vector<32x1xf32>
    %38 = arith.negf %37 : vector<32x1xf32>
    %39 = math.exp %38 : vector<32x1xf32>
    %cst_25 = arith.constant 1.000000e+00 : f32
    %40 = vector.broadcast %cst_25 : f32 to vector<32x1xf32>
    %41 = arith.addf %40, %39 : vector<32x1xf32>
    %42 = arith.divf %40, %41 : vector<32x1xf32>
    %43 = vector.broadcast %42 : vector<32x1xf32> to vector<32x256xf32>
    %44 = arith.mulf %27, %43 : vector<32x256xf32>
    %c1_26 = arith.constant 1 : index
    %c0_27 = arith.constant 0 : index
    %c0_28 = arith.constant 0 : index
    %45 = vector.load %arg6[%c1_26, %c0_27, %c0_28] : memref<2x32x256xf32, #tpu.memory_space<vmem>>, vector<1x32x256xf32>
    %46 = vector.shape_cast %45 : vector<1x32x256xf32> to vector<32x256xf32>
    %47 = vector.shape_cast %44 : vector<32x256xf32> to vector<1x32x256xf32>
    tpu.vector_store %arg6[%c1_26, %c0_27, %c0_28], %47 {strides = array<i32>} : memref<2x32x256xf32, #tpu.memory_space<vmem>>, vector<1x32x256xf32>,
    return
  }
  func.func @transform_0(%arg0: i32) -> (i32, i32, i32) {
    %c0_i32 = arith.constant 0 : i32
    %c0_i32_0 = arith.constant 0 : i32
    %c0_i32_1 = arith.constant 0 : i32
    return %arg0, %c0_i32, %c0_i32_0 : i32, i32, i32
  }
  func.func @transform_1(%arg0: i32) -> (i32, i32) {
    %c0_i32 = arith.constant 0 : i32
    %c0_i32_0 = arith.constant 0 : i32
    %c0_i32_1 = arith.constant 0 : i32
    return %c0_i32, %c0_i32_0 : i32, i32
  }
  func.func @transform_2(%arg0: i32) -> (i32, i32) {
    %c0_i32 = arith.constant 0 : i32
    %c0_i32_0 = arith.constant 0 : i32
    %c0_i32_1 = arith.constant 0 : i32
    return %c0_i32, %c0_i32_0 : i32, i32
  }
  func.func @transform_3(%arg0: i32) -> (i32, i32) {
    %c0_i32 = arith.constant 0 : i32
    %c0_i32_0 = arith.constant 0 : i32
    %c0_i32_1 = arith.constant 0 : i32
    return %c0_i32, %c0_i32_0 : i32, i32
  }
  func.func @transform_4(%arg0: i32) -> (i32, i32) {
    %c0_i32 = arith.constant 0 : i32
    %c0_i32_0 = arith.constant 0 : i32
    %c0_i32_1 = arith.constant 0 : i32
    return %c0_i32, %c0_i32_0 : i32, i32
  }
  func.func @transform_5(%arg0: i32) -> (i32, i32, i32) {
    %c0_i32 = arith.constant 0 : i32
    %c0_i32_0 = arith.constant 0 : i32
    %c0_i32_1 = arith.constant 0 : i32
    return %arg0, %c0_i32, %c0_i32_0 : i32, i32, i32
  }
}

</mosaic_0001>

<llo_original>
// kernel: tpu_custom_call.1
$region0: #{tpu_custom_call.1}
  #allocation0 [shape = 'u32[]', space=smem, size = 0x4, offset = 0x4, fixed_abs, tag = 'smem constant byte address 0x4 - core index']
  #allocation1 [shape = 'u32[144,128]{1,0:T(1,128)}', space=vmem, size = 0x12000, scoped, tag = 'internal scratch']
  %s0 = inlined_call_operand.hbm [shape: f32[2,32,256], index: 0, kind: input, shape index: {}]
  %s1 = inlined_call_operand.vmem [shape: f32[2,32], index: 1, kind: input, shape index: {}]
  %s2 = inlined_call_operand.vmem [shape: f32[2,1], index: 2, kind: input, shape index: {}]
  %s3 = inlined_call_operand.vmem [shape: f32[32,2], index: 3, kind: input, shape index: {}]
  %s4 = inlined_call_operand.vmem [shape: f32[32,1], index: 4, kind: input, shape index: {}]
  %s5 = inlined_call_operand.hbm [shape: f32[2,32,256], index: 5, kind: output, shape index: {}]
  %s6 = sld [smem:[#allocation0]]
  $region34: #{tpu_custom_call.1} parent=0
    _
  %s8 = ssub.s32 1, %s6
  %s9 = scalar_select 0, %s8, %s6
  $region1: #{tpu_custom_call.1} parent=0
    #allocation2 [shape = 'u8[65536]{0}', space=vmem, size = 0x10000, scoped, tag = 'input window, operand 0, single buffered']
    #allocation3 [shape = 's32[1]{0}', space=sflag, size = 0x4, scoped, tag = 'scoped memory for tpu_custom_call.1']
    #allocation4 [shape = 's32[1]{0}', space=sflag, size = 0x4, scoped, tag = 'scoped memory for tpu_custom_call.1']
    #allocation5 [shape = 'u8[65536]{0}', space=vmem, size = 0x10000, scoped, tag = 'output window, operand 0, single buffered']
    %10 = vsyncpa [#allocation3], 0
    %11 = vsyncpa [#allocation4], 0
    // Predicated region
    $region2: #{tpu_custom_call.1} parent=1 // pred_check
      _
    $region3: #{tpu_custom_call.1} parent=1 // pred_check_branch
      %13 = sbr.rel (0) target = $region5
    $region4: #{tpu_custom_call.1} parent=1 // pred_region
      %s15 = ssub.s32 2048, 2048
      %16 = vsyncadd [#allocation3], %s15
      %s17 = sshll.u32 [#allocation2], 4
      %s18 = int_to_ptr.vmem [resolvable:$true] %s17
      %23 = dma.hbm_to_vmem [thread:$0]  %s0, 2048, %s18, [#allocation3], 256, 256, 16
    $region5: #{tpu_custom_call.1} parent=1 // pred_fallthru
      _
    // Predicated region
    $region6: #{tpu_custom_call.1} parent=1 // pred_check
      _
    $region7: #{tpu_custom_call.1} parent=1 // pred_check_branch
      %25 = sbr.rel (0) target = $region9
    $region8: #{tpu_custom_call.1} parent=1 // pred_region
      _
    $region9: #{tpu_custom_call.1} parent=1 // pred_fallthru
      _
    // Predicated region
    $region10: #{tpu_custom_call.1} parent=1 // pred_check
      _
    $region11: #{tpu_custom_call.1} parent=1 // pred_check_branch
      %27 = sbr.rel (0) target = $region13
    $region12: #{tpu_custom_call.1} parent=1 // pred_region
      _
    $region13: #{tpu_custom_call.1} parent=1 // pred_fallthru
      _
    // Predicated region
    $region14: #{tpu_custom_call.1} parent=1 // pred_check
      _
    $region15: #{tpu_custom_call.1} parent=1 // pred_check_branch
      %29 = sbr.rel (0) target = $region17
    $region16: #{tpu_custom_call.1} parent=1 // pred_region
      _
    $region17: #{tpu_custom_call.1} parent=1 // pred_fallthru
      _
    // Predicated region
    $region18: #{tpu_custom_call.1} parent=1 // pred_check
      _
    $region19: #{tpu_custom_call.1} parent=1 // pred_check_branch
      %31 = sbr.rel (0) target = $region21
    $region20: #{tpu_custom_call.1} parent=1 // pred_region
      _
    $region21: #{tpu_custom_call.1} parent=1 // pred_fallthru
      _
    // Predicated region
    $region22: #{tpu_custom_call.1} parent=1 // pred_check
      _
    $region23: #{tpu_custom_call.1} parent=1 // pred_check_branch
      %33 = sbr.rel (0) target = $region25
    $region24: #{tpu_custom_call.1} parent=1 // pred_region
      %34 = dma.done [#allocation3], 2048
    $region25: #{tpu_custom_call.1} parent=1 // pred_fallthru
      _
    %v35 = vld [vmem:[%s1] sm:$0x3]
    %v36 = vld [vmem:[%s2] sm:$0x3]
    %v37 = vld [vmem:[%s3] sm:$0xff]
    %v38 = vld [vmem:[%s3 + $0x8] sm:$0xff]
    %v39 = vld [vmem:[%s3 + $0x10] sm:$0xff]
    %v40 = vld [vmem:[%s3 + $0x18] sm:$0xff]
    %v41 = vld [vmem:[%s4] sm:$0xff]
    %v42 = vld [vmem:[%s4 + $0x8] sm:$0xff]
    %v43 = vld [vmem:[%s4 + $0x10] sm:$0xff]
    %v44 = vld [vmem:[%s4 + $0x18] sm:$0xff]
    %v45 = vld [vmem:[#allocation2] sm:$0xff]
    %v46 = vld [vmem:[#allocation2 + $0x8] sm:$0xff]
    %v47 = vld [vmem:[#allocation2 + $0x10] sm:$0xff]
    %v48 = vld [vmem:[#allocation2 + $0x18] sm:$0xff]
    %v49 = vld [vmem:[#allocation2 + $0x20] sm:$0xff]
    %v50 = vld [vmem:[#allocation2 + $0x28] sm:$0xff]
    %v51 = vld [vmem:[#allocation2 + $0x30] sm:$0xff]
    %v52 = vld [vmem:[#allocation2 + $0x38] sm:$0xff]
    %v53 = vadd.f32 %v45, %v46
    %54 = vadd.xlane.f32.xlu0 %v53
    %v55 = vpop.xlane.xlu0 %54
    %v56 = vadd.f32 %v47, %v48
    %57 = vadd.xlane.f32.xlu0 %v56
    %v58 = vpop.xlane.xlu0 %57
    %v59 = vadd.f32 %v49, %v50
    %60 = vadd.xlane.f32.xlu0 %v59
    %v61 = vpop.xlane.xlu0 %60
    %v62 = vadd.f32 %v51, %v52
    %63 = vadd.xlane.f32.xlu0 %v62
    %v64 = vpop.xlane.xlu0 %63
    %v65 = vmul.f32 %v55, 0.00390625
    %v66 = vmul.f32 %v58, 0.00390625
    %v67 = vmul.f32 %v61, 0.00390625
    %v68 = vmul.f32 %v64, 0.00390625
    %vm69 = vcmask 261120
    %v71 = vsel %vm69, %v35, 0
    %73 = vmatprep.subr.mxu0 0.0
    %74 = vmatpush1.msra.mxu0 %v65
    %75 = vmatprep.subr.mxu0 0.0
    %76 = vmatpush1.msra.mxu0 %v66
    %77 = vmatprep.subr.mxu0 0.0
    %78 = vmatpush1.msra.mxu0 %v67
    %79 = vmatprep.subr.mxu0 0.0
    %80 = vmatpush1.msra.mxu0 %v68
    %81 = vmatprep.subr.mxu0 0.0
    %82 = vmatpush1.msra.mxu0 0.0
    %83 = vmatprep.subr.mxu0 0.0
    %84 = vmatpush1.msra.mxu0 0.0
    %85 = vmatprep.subr.mxu0 0.0
    %86 = vmatpush1.msra.mxu0 0.0
    %87 = vmatprep.subr.mxu0 0.0
    %88 = vmatpush1.msra.mxu0 0.0
    %89 = vmatprep.subr.mxu0 0.0
    %90 = vmatpush1.msra.mxu0 0.0
    %91 = vmatprep.subr.mxu0 0.0
    %92 = vmatpush1.msra.mxu0 0.0
    %93 = vmatprep.subr.mxu0 0.0
    %94 = vmatpush1.msra.mxu0 0.0
    %95 = vmatprep.subr.mxu0 0.0
    %96 = vmatpush1.msra.mxu0 0.0
    %97 = vmatprep.subr.mxu0 0.0
    %98 = vmatpush1.msra.mxu0 0.0
    %99 = vmatprep.subr.mxu0 0.0
    %100 = vmatpush1.msra.mxu0 0.0
    %101 = vmatprep.subr.mxu0 0.0
    %102 = vmatpush1.msra.mxu0 0.0
    %103 = vmatprep.subr.mxu0 0.0
    %104 = vmatpush1.msra.mxu0 0.0
    %105 = vmatprep.subr.mxu0 0.0
    %106 = vmatpush1.msra.mxu0 0.0
    %107 = vmatprep.subr.mxu0 0.0
    %108 = vmatpush1.msra.mxu0 0.0
    %109 = vmatprep.subr.mxu0 0.0
    %110 = vmatpush1.msra.mxu0 0.0
    %111 = vmatprep.subr.mxu0 0.0
    %112 = vmatpush1.msra.mxu0 0.0
    %113 = vmatprep.subr.mxu0 0.0
    %114 = vmatpush1.msra.mxu0 0.0
    %115 = vmatprep.subr.mxu0 0.0
    %116 = vmatpush1.msra.mxu0 0.0
    %117 = vmatprep.subr.mxu0 0.0
    %118 = vmatpush1.msra.mxu0 0.0
    %119 = vmatprep.subr.mxu0 0.0
    %120 = vmatpush1.msra.mxu0 0.0
    %121 = vmatprep.subr.mxu0 0.0
    %122 = vmatpush1.msra.mxu0 0.0
    %123 = vmatprep.subr.mxu0 0.0
    %124 = vmatpush1.msra.mxu0 0.0
    %125 = vmatprep.subr.mxu0 0.0
    %126 = vmatpush1.msra.mxu0 0.0
    %127 = vmatprep.subr.mxu0 0.0
    %128 = vmatpush1.msra.mxu0 0.0
    %129 = vmatprep.subr.mxu0 0.0
    %130 = vmatpush1.msra.mxu0 0.0
    %131 = vmatprep.subr.mxu0 0.0
    %132 = vmatpush1.msra.mxu0 0.0
    %133 = vmatprep.subr.mxu0 0.0
    %134 = vmatpush1.msra.mxu0 0.0
    %135 = vmatprep.subr.mxu0 0.0
    %136 = vmatpush1.msra.mxu0 0.0
    %137 = vmatprep.mubr.f32.mxu0 0.0
    %138 = vmatmul.mubr.f32.gmra.mrb[0].mxu0 %v71
    %v139 = vpop.f32.mrb[0].mxu0
    %v140 = vadd.f32 %v36, %v139
    %v141 = vpop.f32.mrb[0].mxu0
    %142 = vdwg.mxu0
    %v143 = vmax.f32 %v140, 0.0
    %vm144 = vcmask 15360
    %v146 = vsel %vm144, %v37, 0
    %v149 = vsel %vm144, %v38, 0
    %v152 = vsel %vm144, %v39, 0
    %v155 = vsel %vm144, %v40, 0
    %vm157 = vcmask 1041408
    %v159 = vsel %vm157, %v143, 0
    %161 = vmatprep.subr.mxu0 0.0
    %162 = vmatpush1.msra.mxu0 %v159
    %163 = vmatprep.subr.mxu0 0.0
    %164 = vmatpush1.msra.mxu0 0.0
    %165 = vmatprep.subr.mxu0 0.0
    %166 = vmatpush1.msra.mxu0 0.0
    %167 = vmatprep.subr.mxu0 0.0
    %168 = vmatpush1.msra.mxu0 0.0
    %169 = vmatprep.subr.mxu0 0.0
    %170 = vmatpush1.msra.mxu0 0.0
    %171 = vmatprep.subr.mxu0 0.0
    %172 = vmatpush1.msra.mxu0 0.0
    %173 = vmatprep.subr.mxu0 0.0
    %174 = vmatpush1.msra.mxu0 0.0
    %175 = vmatprep.subr.mxu0 0.0
    %176 = vmatpush1.msra.mxu0 0.0
    %177 = vmatprep.subr.mxu0 0.0
    %178 = vmatpush1.msra.mxu0 0.0
    %179 = vmatprep.subr.mxu0 0.0
    %180 = vmatpush1.msra.mxu0 0.0
    %181 = vmatprep.subr.mxu0 0.0
    %182 = vmatpush1.msra.mxu0 0.0
    %183 = vmatprep.subr.mxu0 0.0
    %184 = vmatpush1.msra.mxu0 0.0
    %185 = vmatprep.subr.mxu0 0.0
    %186 = vmatpush1.msra.mxu0 0.0
    %187 = vmatprep.subr.mxu0 0.0
    %188 = vmatpush1.msra.mxu0 0.0
    %189 = vmatprep.subr.mxu0 0.0
    %190 = vmatpush1.msra.mxu0 0.0
    %191 = vmatprep.subr.mxu0 0.0
    %192 = vmatpush1.msra.mxu0 0.0
    %193 = vmatprep.subr.mxu0 0.0
    %194 = vmatpush1.msra.mxu0 0.0
    %195 = vmatprep.subr.mxu0 0.0
    %196 = vmatpush1.msra.mxu0 0.0
    %197 = vmatprep.subr.mxu0 0.0
    %198 = vmatpush1.msra.mxu0 0.0
    %199 = vmatprep.subr.mxu0 0.0
    %200 = vmatpush1.msra.mxu0 0.0
    %201 = vmatprep.subr.mxu0 0.0
    %202 = vmatpush1.msra.mxu0 0.0
    %203 = vmatprep.subr.mxu0 0.0
    %204 = vmatpush1.msra.mxu0 0.0
    %205 = vmatprep.subr.mxu0 0.0
    %206 = vmatpush1.msra.mxu0 0.0
    %207 = vmatprep.subr.mxu0 0.0
    %208 = vmatpush1.msra.mxu0 0.0
    %209 = vmatprep.subr.mxu0 0.0
    %210 = vmatpush1.msra.mxu0 0.0
    %211 = vmatprep.subr.mxu0 0.0
    %212 = vmatpush1.msra.mxu0 0.0
    %213 = vmatprep.subr.mxu0 0.0
    %214 = vmatpush1.msra.mxu0 0.0
    %215 = vmatprep.subr.mxu0 0.0
    %216 = vmatpush1.msra.mxu0 0.0
    %217 = vmatprep.subr.mxu0 0.0
    %218 = vmatpush1.msra.mxu0 0.0
    %219 = vmatprep.subr.mxu0 0.0
    %220 = vmatpush1.msra.mxu0 0.0
    %221 = vmatprep.subr.mxu0 0.0
    %222 = vmatpush1.msra.mxu0 0.0
    %223 = vmatprep.subr.mxu0 0.0
    %224 = vmatpush1.msra.mxu0 0.0
    %225 = vmatprep.mubr.f32.mxu0 0.0
    %226 = vmatmul.mubr.f32.gmra.mrb[0].mxu0 %v146
    %v227 = vpop.f32.mrb[0].mxu0
    %v228 = vadd.f32 %v41, %v227
    %v229 = vpop.f32.mrb[0].mxu0
    %230 = vmatprep.mubr.f32.mxu0 0.0
    %231 = vmatmul.mubr.f32.gmra.mrb[0].mxu0 %v149
    %v232 = vpop.f32.mrb[0].mxu0
    %v233 = vadd.f32 %v42, %v232
    %v234 = vpop.f32.mrb[0].mxu0
    %235 = vmatprep.mubr.f32.mxu0 0.0
    %236 = vmatmul.mubr.f32.gmra.mrb[0].mxu0 %v152
    %v237 = vpop.f32.mrb[0].mxu0
    %v238 = vadd.f32 %v43, %v237
    %v239 = vpop.f32.mrb[0].mxu0
    %240 = vmatprep.mubr.f32.mxu0 0.0
    %241 = vmatmul.mubr.f32.gmra.mrb[0].mxu0 %v155
    %v242 = vpop.f32.mrb[0].mxu0
    %v243 = vadd.f32 %v44, %v242
    %v244 = vpop.f32.mrb[0].mxu0
    %245 = vdwg.mxu0
    %v246 = vxor.u32 %v228, 2147483648
    %v247 = vxor.u32 %v233, 2147483648
    %v248 = vxor.u32 %v238, 2147483648
    %v249 = vxor.u32 %v243, 2147483648
    %v250 = vmul.f32 %v246, 1.442695
    %v251 = vpow.pop %v250
    %v252 = vmul.f32 %v247, 1.442695
    %v253 = vpow.pop %v252
    %v254 = vmul.f32 %v248, 1.442695
    %v255 = vpow.pop %v254
    %v256 = vmul.f32 %v249, 1.442695
    %v257 = vpow.pop %v256
    %v258 = vadd.f32 %v251, 1.0
    %v259 = vadd.f32 %v253, 1.0
    %v260 = vadd.f32 %v255, 1.0
    %v261 = vadd.f32 %v257, 1.0
    %v262 = vrcp.pop %v258
    %v263 = vmul.f32 1.0, %v262
    %v264 = vrcp.pop %v259
    %v265 = vmul.f32 1.0, %v264
    %v266 = vrcp.pop %v260
    %v267 = vmul.f32 1.0, %v266
    %v268 = vrcp.pop %v261
    %v269 = vmul.f32 1.0, %v268
    %271 = vset.pattern.permute.xlu0 0
    %272 = vperm.xlu0 %271, %v263
    %v273 = vpop.permute.xlu0 %272
    %276 = vset.pattern.permute.xlu0 0
    %277 = vperm.xlu0 %276, %v265
    %v278 = vpop.permute.xlu0 %277
    %281 = vset.pattern.permute.xlu0 0
    %282 = vperm.xlu0 %281, %v267
    %v283 = vpop.permute.xlu0 %282
    %286 = vset.pattern.permute.xlu0 0
    %287 = vperm.xlu0 %286, %v269
    %v288 = vpop.permute.xlu0 %287
    %v290 = vmul.f32 %v45, %v273
    %v291 = vmul.f32 %v46, %v273
    %v292 = vmul.f32 %v47, %v278
    %v293 = vmul.f32 %v48, %v278
    %v294 = vmul.f32 %v49, %v283
    %v295 = vmul.f32 %v50, %v283
    %v296 = vmul.f32 %v51, %v288
    %v297 = vmul.f32 %v52, %v288
    %298 = vst [vmem:[#allocation5] sm:$0xff] %v290
    %299 = vst [vmem:[#allocation5 + $0x8] sm:$0xff] %v291
    %300 = vst [vmem:[#allocation5 + $0x10] sm:$0xff] %v292
    %301 = vst [vmem:[#allocation5 + $0x18] sm:$0xff] %v293
    %302 = vst [vmem:[#allocation5 + $0x20] sm:$0xff] %v294
    %303 = vst [vmem:[#allocation5 + $0x28] sm:$0xff] %v295
    %304 = vst [vmem:[#allocation5 + $0x30] sm:$0xff] %v296
    %305 = vst [vmem:[#allocation5 + $0x38] sm:$0xff] %v297
    %s306 = scalar_lea.vmem [#allocation2], 64
    %v307 = vld [vmem:[%s306] sm:$0xff]
    %v308 = vld [vmem:[%s306 + $0x8] sm:$0xff]
    %v309 = vld [vmem:[%s306 + $0x10] sm:$0xff]
    %v310 = vld [vmem:[%s306 + $0x18] sm:$0xff]
    %v311 = vld [vmem:[%s306 + $0x20] sm:$0xff]
    %v312 = vld [vmem:[%s306 + $0x28] sm:$0xff]
    %v313 = vld [vmem:[%s306 + $0x30] sm:$0xff]
    %v314 = vld [vmem:[%s306 + $0x38] sm:$0xff]
    %v315 = vadd.f32 %v307, %v308
    %316 = vadd.xlane.f32.xlu0 %v315
    %v317 = vpop.xlane.xlu0 %316
    %v318 = vadd.f32 %v309, %v310
    %319 = vadd.xlane.f32.xlu0 %v318
    %v320 = vpop.xlane.xlu0 %319
    %v321 = vadd.f32 %v311, %v312
    %322 = vadd.xlane.f32.xlu0 %v321
    %v323 = vpop.xlane.xlu0 %322
    %v324 = vadd.f32 %v313, %v314
    %325 = vadd.xlane.f32.xlu0 %v324
    %v326 = vpop.xlane.xlu0 %325
    %v327 = vmul.f32 %v317, 0.00390625
    %v328 = vmul.f32 %v320, 0.00390625
    %v329 = vmul.f32 %v323, 0.00390625
    %v330 = vmul.f32 %v326, 0.00390625
    %331 = vmatprep.subr.mxu0 0.0
    %332 = vmatpush1.msra.mxu0 %v327
    %333 = vmatprep.subr.mxu0 0.0
    %334 = vmatpush1.msra.mxu0 %v328
    %335 = vmatprep.subr.mxu0 0.0
    %336 = vmatpush1.msra.mxu0 %v329
    %337 = vmatprep.subr.mxu0 0.0
    %338 = vmatpush1.msra.mxu0 %v330
    %339 = vmatprep.subr.mxu0 0.0
    %340 = vmatpush1.msra.mxu0 0.0
    %341 = vmatprep.subr.mxu0 0.0
    %342 = vmatpush1.msra.mxu0 0.0
    %343 = vmatprep.subr.mxu0 0.0
    %344 = vmatpush1.msra.mxu0 0.0
    %345 = vmatprep.subr.mxu0 0.0
    %346 = vmatpush1.msra.mxu0 0.0
    %347 = vmatprep.subr.mxu0 0.0
    %348 = vmatpush1.msra.mxu0 0.0
    %349 = vmatprep.subr.mxu0 0.0
    %350 = vmatpush1.msra.mxu0 0.0
    %351 = vmatprep.subr.mxu0 0.0
    %352 = vmatpush1.msra.mxu0 0.0
    %353 = vmatprep.subr.mxu0 0.0
    %354 = vmatpush1.msra.mxu0 0.0
    %355 = vmatprep.subr.mxu0 0.0
    %356 = vmatpush1.msra.mxu0 0.0
    %357 = vmatprep.subr.mxu0 0.0
    %358 = vmatpush1.msra.mxu0 0.0
    %359 = vmatprep.subr.mxu0 0.0
    %360 = vmatpush1.msra.mxu0 0.0
    %361 = vmatprep.subr.mxu0 0.0
    %362 = vmatpush1.msra.mxu0 0.0
    %363 = vmatprep.subr.mxu0 0.0
    %364 = vmatpush1.msra.mxu0 0.0
    %365 = vmatprep.subr.mxu0 0.0
    %366 = vmatpush1.msra.mxu0 0.0
    %367 = vmatprep.subr.mxu0 0.0
    %368 = vmatpush1.msra.mxu0 0.0
    %369 = vmatprep.subr.mxu0 0.0
    %370 = vmatpush1.msra.mxu0 0.0
    %371 = vmatprep.subr.mxu0 0.0
    %372 = vmatpush1.msra.mxu0 0.0
    %373 = vmatprep.subr.mxu0 0.0
    %374 = vmatpush1.msra.mxu0 0.0
    %375 = vmatprep.subr.mxu0 0.0
    %376 = vmatpush1.msra.mxu0 0.0
    %377 = vmatprep.subr.mxu0 0.0
    %378 = vmatpush1.msra.mxu0 0.0
    %379 = vmatprep.subr.mxu0 0.0
    %380 = vmatpush1.msra.mxu0 0.0
    %381 = vmatprep.subr.mxu0 0.0
    %382 = vmatpush1.msra.mxu0 0.0
    %383 = vmatprep.subr.mxu0 0.0
    %384 = vmatpush1.msra.mxu0 0.0
    %385 = vmatprep.subr.mxu0 0.0
    %386 = vmatpush1.msra.mxu0 0.0
    %387 = vmatprep.subr.mxu0 0.0
    %388 = vmatpush1.msra.mxu0 0.0
    %389 = vmatprep.subr.mxu0 0.0
    %390 = vmatpush1.msra.mxu0 0.0
    %391 = vmatprep.subr.mxu0 0.0
    %392 = vmatpush1.msra.mxu0 0.0
    %393 = vmatprep.subr.mxu0 0.0
    %394 = vmatpush1.msra.mxu0 0.0
    %395 = vmatprep.mubr.f32.mxu0 0.0
    %396 = vmatmul.mubr.f32.gmra.mrb[0].mxu0 %v71
    %v397 = vpop.f32.mrb[0].mxu0
    %v398 = vadd.f32 %v36, %v397
    %v399 = vpop.f32.mrb[0].mxu0
    %400 = vdwg.mxu0
    %v401 = vmax.f32 %v398, 0.0
    %v403 = vsel %vm157, %v401, 0
    %405 = vmatprep.subr.mxu0 0.0
    %406 = vmatpush1.msra.mxu0 %v403
    %407 = vmatprep.subr.mxu0 0.0
    %408 = vmatpush1.msra.mxu0 0.0
    %409 = vmatprep.subr.mxu0 0.0
    %410 = vmatpush1.msra.mxu0 0.0
    %411 = vmatprep.subr.mxu0 0.0
    %412 = vmatpush1.msra.mxu0 0.0
    %413 = vmatprep.subr.mxu0 0.0
    %414 = vmatpush1.msra.mxu0 0.0
    %415 = vmatprep.subr.mxu0 0.0
    %416 = vmatpush1.msra.mxu0 0.0
    %417 = vmatprep.subr.mxu0 0.0
    %418 = vmatpush1.msra.mxu0 0.0
    %419 = vmatprep.subr.mxu0 0.0
    %420 = vmatpush1.msra.mxu0 0.0
    %421 = vmatprep.subr.mxu0 0.0
    %422 = vmatpush1.msra.mxu0 0.0
    %423 = vmatprep.subr.mxu0 0.0
    %424 = vmatpush1.msra.mxu0 0.0
    %425 = vmatprep.subr.mxu0 0.0
    %426 = vmatpush1.msra.mxu0 0.0
    %427 = vmatprep.subr.mxu0 0.0
    %428 = vmatpush1.msra.mxu0 0.0
    %429 = vmatprep.subr.mxu0 0.0
    %430 = vmatpush1.msra.mxu0 0.0
    %431 = vmatprep.subr.mxu0 0.0
    %432 = vmatpush1.msra.mxu0 0.0
    %433 = vmatprep.subr.mxu0 0.0
    %434 = vmatpush1.msra.mxu0 0.0
    %435 = vmatprep.subr.mxu0 0.0
    %436 = vmatpush1.msra.mxu0 0.0
    %437 = vmatprep.subr.mxu0 0.0
    %438 = vmatpush1.msra.mxu0 0.0
    %439 = vmatprep.subr.mxu0 0.0
    %440 = vmatpush1.msra.mxu0 0.0
    %441 = vmatprep.subr.mxu0 0.0
    %442 = vmatpush1.msra.mxu0 0.0
    %443 = vmatprep.subr.mxu0 0.0
    %444 = vmatpush1.msra.mxu0 0.0
    %445 = vmatprep.subr.mxu0 0.0
    %446 = vmatpush1.msra.mxu0 0.0
    %447 = vmatprep.subr.mxu0 0.0
    %448 = vmatpush1.msra.mxu0 0.0
    %449 = vmatprep.subr.mxu0 0.0
    %450 = vmatpush1.msra.mxu0 0.0
    %451 = vmatprep.subr.mxu0 0.0
    %452 = vmatpush1.msra.mxu0 0.0
    %453 = vmatprep.subr.mxu0 0.0
    %454 = vmatpush1.msra.mxu0 0.0
    %455 = vmatprep.subr.mxu0 0.0
    %456 = vmatpush1.msra.mxu0 0.0
    %457 = vmatprep.subr.mxu0 0.0
    %458 = vmatpush1.msra.mxu0 0.0
    %459 = vmatprep.subr.mxu0 0.0
    %460 = vmatpush1.msra.mxu0 0.0
    %461 = vmatprep.subr.mxu0 0.0
    %462 = vmatpush1.msra.mxu0 0.0
    %463 = vmatprep.subr.mxu0 0.0
    %464 = vmatpush1.msra.mxu0 0.0
    %465 = vmatprep.subr.mxu0 0.0
    %466 = vmatpush1.msra.mxu0 0.0
    %467 = vmatprep.subr.mxu0 0.0
    %468 = vmatpush1.msra.mxu0 0.0
    %469 = vmatprep.mubr.f32.mxu0 0.0
    %470 = vmatmul.mubr.f32.gmra.mrb[0].mxu0 %v146
    %v471 = vpop.f32.mrb[0].mxu0
    %v472 = vadd.f32 %v41, %v471
    %v473 = vpop.f32.mrb[0].mxu0
    %474 = vmatprep.mubr.f32.mxu0 0.0
    %475 = vmatmul.mubr.f32.gmra.mrb[0].mxu0 %v149
    %v476 = vpop.f32.mrb[0].mxu0
    %v477 = vadd.f32 %v42, %v476
    %v478 = vpop.f32.mrb[0].mxu0
    %479 = vmatprep.mubr.f32.mxu0 0.0
    %480 = vmatmul.mubr.f32.gmra.mrb[0].mxu0 %v152
    %v481 = vpop.f32.mrb[0].mxu0
    %v482 = vadd.f32 %v43, %v481
    %v483 = vpop.f32.mrb[0].mxu0
    %484 = vmatprep.mubr.f32.mxu0 0.0
    %485 = vmatmul.mubr.f32.gmra.mrb[0].mxu0 %v155
    %v486 = vpop.f32.mrb[0].mxu0
    %v487 = vadd.f32 %v44, %v486
    %v488 = vpop.f32.mrb[0].mxu0
    %489 = vdwg.mxu0
    %v490 = vxor.u32 %v472, 2147483648
    %v491 = vxor.u32 %v477, 2147483648
    %v492 = vxor.u32 %v482, 2147483648
    %v493 = vxor.u32 %v487, 2147483648
    %v494 = vmul.f32 %v490, 1.442695
    %v495 = vpow.pop %v494
    %v496 = vmul.f32 %v491, 1.442695
    %v497 = vpow.pop %v496
    %v498 = vmul.f32 %v492, 1.442695
    %v499 = vpow.pop %v498
    %v500 = vmul.f32 %v493, 1.442695
    %v501 = vpow.pop %v500
    %v502 = vadd.f32 %v495, 1.0
    %v503 = vadd.f32 %v497, 1.0
    %v504 = vadd.f32 %v499, 1.0
    %v505 = vadd.f32 %v501, 1.0
    %v506 = vrcp.pop %v502
    %v507 = vmul.f32 1.0, %v506
    %v508 = vrcp.pop %v503
    %v509 = vmul.f32 1.0, %v508
    %v510 = vrcp.pop %v504
    %v511 = vmul.f32 1.0, %v510
    %v512 = vrcp.pop %v505
    %v513 = vmul.f32 1.0, %v512
    %515 = vset.pattern.permute.xlu0 0
    %516 = vperm.xlu0 %515, %v507
    %v517 = vpop.permute.xlu0 %516
    %520 = vset.pattern.permute.xlu0 0
    %521 = vperm.xlu0 %520, %v509
    %v522 = vpop.permute.xlu0 %521
    %525 = vset.pattern.permute.xlu0 0
    %526 = vperm.xlu0 %525, %v511
    %v527 = vpop.permute.xlu0 %526
    %530 = vset.pattern.permute.xlu0 0
    %531 = vperm.xlu0 %530, %v513
    %v532 = vpop.permute.xlu0 %531
    %v534 = vmul.f32 %v307, %v517
    %v535 = vmul.f32 %v308, %v517
    %v536 = vmul.f32 %v309, %v522
    %v537 = vmul.f32 %v310, %v522
    %v538 = vmul.f32 %v311, %v527
    %v539 = vmul.f32 %v312, %v527
    %v540 = vmul.f32 %v313, %v532
    %v541 = vmul.f32 %v314, %v532
    %s542 = scalar_lea.vmem [#allocation5], 64
    %543 = vst [vmem:[%s542] sm:$0xff] %v534
    %544 = vst [vmem:[%s542 + $0x8] sm:$0xff] %v535
    %545 = vst [vmem:[%s542 + $0x10] sm:$0xff] %v536
    %546 = vst [vmem:[%s542 + $0x18] sm:$0xff] %v537
    %547 = vst [vmem:[%s542 + $0x20] sm:$0xff] %v538
    %548 = vst [vmem:[%s542 + $0x28] sm:$0xff] %v539
    %549 = vst [vmem:[%s542 + $0x30] sm:$0xff] %v540
    %550 = vst [vmem:[%s542 + $0x38] sm:$0xff] %v541
    // Predicated region
    $region26: #{tpu_custom_call.1} parent=1 // pred_check
      _
    $region27: #{tpu_custom_call.1} parent=1 // pred_check_branch
      %552 = sbr.rel (0) target = $region29
    $region28: #{tpu_custom_call.1} parent=1 // pred_region
      %s554 = ssub.s32 2048, 2048
      %555 = vsyncadd [#allocation4], %s554
      %s556 = sshll.u32 [#allocation5], 4
      %s557 = int_to_ptr.vmem [resolvable:$true] %s556
      %562 = dma.vmem_to_hbm [thread:$0]  %s557, 2048, %s5, [#allocation4], 256, 256, 16
    $region29: #{tpu_custom_call.1} parent=1 // pred_fallthru
      _
    // Predicated region
    $region30: #{tpu_custom_call.1} parent=1 // pred_check
      _
    $region31: #{tpu_custom_call.1} parent=1 // pred_check_branch
      %564 = sbr.rel (0) target = $region33
    $region32: #{tpu_custom_call.1} parent=1 // pred_region
      %565 = dma.done [#allocation4], 2048
    $region33: #{tpu_custom_call.1} parent=1 // pred_fallthru
      _
    %566 = vsyncpa [#allocation3], 1
    %567 = vsyncpa [#allocation4], 1

</llo_original>
